<compile_context>
chip_gen: v7x
topology: tpu7x:2x2x1
jax: 0.10.0
libtpu: 0.0.40
codegen_flags: <defaults>
</compile_context>

<pallas_src>
import functools

import jax
import jax.numpy as jnp
from jax.experimental import pallas as pl
from jax.experimental.pallas import tpu as pltpu

EPS = 1e-5


def _round_up(x, m):
    return (x + m - 1) // m * m


# ----------------------------------------------------------------------------
# Pallas kernels
# ----------------------------------------------------------------------------
def _matmul_bias_kernel(a_ref, b_ref, bias_ref, o_ref):
    o_ref[...] = (
        jnp.dot(a_ref[...], b_ref[...], preferred_element_type=jnp.float32)
        + bias_ref[...]
    )


@jax.jit
def pallas_matmul(a, b, bias):
    """(M, K) @ (K, N) + bias(N,) -> f32 (M, N).

    bf16 MXU inputs / f32 accumulation; N padded to a multiple of 128 so output
    stores are lane-dense; M tiled 256-aligned with >=2 grid steps when possible.
    Working sets here are tiny (<2 MiB), so no K tiling is needed.
    """
    M, K = a.shape
    N = b.shape[1]
    Np = _round_up(N, 128)
    a16 = a.astype(jnp.bfloat16)
    b16 = b.astype(jnp.bfloat16)
    bias_p = bias.astype(jnp.float32).reshape(1, N)
    if Np != N:
        b16 = jnp.pad(b16, ((0, 0), (0, Np - N)))
        bias_p = jnp.pad(bias_p, ((0, 0), (0, Np - N)))

    TM = M
    for cand in (512, 256, 128):            # prefer 256-aligned tiles, >=2 parallel steps
        if M % cand == 0 and M // cand >= 2:
            TM = cand
            break

    out = pl.pallas_call(
        _matmul_bias_kernel,
        out_shape=jax.ShapeDtypeStruct((M, Np), jnp.float32),
        grid=(M // TM,),
        in_specs=[
            pl.BlockSpec((TM, K), lambda i: (i, 0)),
            pl.BlockSpec((K, Np), lambda i: (0, 0)),
            pl.BlockSpec((1, Np), lambda i: (0, 0)),
        ],
        out_specs=pl.BlockSpec((TM, Np), lambda i: (i, 0)),
        compiler_params=pltpu.CompilerParams(dimension_semantics=("parallel",)),
    )(a16, b16, bias_p)
    return out if Np == N else out[:, :N]


def _afn_kernel(x_ref, ag_ref, ab_ref, g_ref, bt_ref, o_ref, *, axis):
    x = x_ref[...]                                   # (1, D1, D2)
    n = x.shape[axis]
    mean = jnp.mean(x, axis=axis, keepdims=True)
    d = x - mean
    # torch.var_mean default is unbiased (n-1); guard the degenerate n==1 case.
    var = jnp.sum(d * d, axis=axis, keepdims=True) * (1.0 / max(n - 1, 1))
    x_norm = d * jax.lax.rsqrt(var + EPS)
    o_ref[...] = (1.0 + ag_ref[...]) * g_ref[...] * x_norm + ab_ref[...] * bt_ref[...]


@functools.partial(jax.jit, static_argnames=("axis",))
def _pallas_afn_call(x3, ag3, ab3, g3, b3, *, axis):
    B, D1, D2 = x3.shape
    kern = functools.partial(_afn_kernel, axis=axis)
    return pl.pallas_call(
        kern,
        out_shape=jax.ShapeDtypeStruct((B, D1, D2), jnp.float32),
        grid=(B,),
        in_specs=[
            pl.BlockSpec((1, D1, D2), lambda b: (b, 0, 0)),
            pl.BlockSpec((1,) + ag3.shape[1:], lambda b: (b, 0, 0)),
            pl.BlockSpec((1,) + ab3.shape[1:], lambda b: (b, 0, 0)),
            pl.BlockSpec((1,) + g3.shape[1:], lambda b: (0, 0, 0)),
            pl.BlockSpec((1,) + b3.shape[1:], lambda b: (0, 0, 0)),
        ],
        out_specs=pl.BlockSpec((1, D1, D2), lambda b: (b, 0, 0)),
        compiler_params=pltpu.CompilerParams(dimension_semantics=("parallel",)),
    )(x3, ag3, ab3, g3, b3)


def _attn_kernel(q_ref, k_ref, v_ref, o_ref, *, scale):
    q = q_ref[...].astype(jnp.bfloat16)              # (GB, H, W)
    k = k_ref[...].astype(jnp.bfloat16)
    v = v_ref[...].astype(jnp.bfloat16)
    s = jnp.einsum("bqd,bkd->bqk", q, k,
                   preferred_element_type=jnp.float32) * scale
    s = s - jnp.max(s, axis=-1, keepdims=True)
    e = jnp.exp(s)
    denom = jnp.sum(e, axis=-1, keepdims=True)
    p = e * pl.reciprocal(denom, approx=True)
    o_ref[...] = jnp.einsum("bqk,bkd->bqd", p.astype(jnp.bfloat16), v,
                            preferred_element_type=jnp.float32)


@functools.partial(jax.jit, static_argnums=(3,))
def pallas_attn(q, k, v, scale):
    """Batched spatial attention over G = B*heads*head_dim slices of (H, W)."""
    G, H, W = q.shape
    GB = G
    for cand in (32, 16, 8):                         # batch slices per grid step
        if G % cand == 0 and G // cand >= 2:
            GB = cand
            break
    kern = functools.partial(_attn_kernel, scale=scale)
    return pl.pallas_call(
        kern,
        out_shape=jax.ShapeDtypeStruct((G, H, W), jnp.float32),
        grid=(G // GB,),
        in_specs=[pl.BlockSpec((GB, H, W), lambda g: (g, 0, 0))] * 3,
        out_specs=pl.BlockSpec((GB, H, W), lambda g: (g, 0, 0)),
        compiler_params=pltpu.CompilerParams(dimension_semantics=("parallel",)),
    )(q, k, v)


# ----------------------------------------------------------------------------
# Conv wrappers (NHWC, PyTorch-semantics weights) -> Pallas matmul
# ----------------------------------------------------------------------------
def conv2d(x, w, b, stride=1, padding=0):
    """NHWC Conv2d with PyTorch OIHW weights via im2col + Pallas matmul."""
    B, H, W, Cin = x.shape
    Cout, _, kh, kw = w.shape
    if kh == 1 and kw == 1 and stride == 1 and padding == 0:
        out = pallas_matmul(x.reshape(B * H * W, Cin), w.reshape(Cout, Cin).T, b)
        return out.reshape(B, H, W, Cout)
    if padding > 0:
        x = jnp.pad(x, ((0, 0), (padding, padding), (padding, padding), (0, 0)))
    Hp, Wp = H + 2 * padding, W + 2 * padding
    Ho = (Hp - kh) // stride + 1
    Wo = (Wp - kw) // stride + 1
    taps = []
    for dy in range(kh):
        for dx in range(kw):
            taps.append(x[:, dy:dy + stride * (Ho - 1) + 1:stride,
                             dx:dx + stride * (Wo - 1) + 1:stride, :])
    patches = jnp.concatenate(taps, axis=-1)                       # (B,Ho,Wo,kh*kw*Cin)
    a = patches.reshape(B * Ho * Wo, kh * kw * Cin)
    wm = w.transpose(2, 3, 1, 0).reshape(kh * kw * Cin, Cout)      # (tap, cin) ordering
    out = pallas_matmul(a, wm, b)
    return out.reshape(B, Ho, Wo, Cout)


def conv_transpose2d_2x2(x, w, b):
    """ConvTranspose2d(kernel=2, stride=2), NHWC.  PyTorch weight (Cin, Cout, 2, 2)."""
    B, H, W, Cin = x.shape
    Cout = w.shape[1]
    a = x.reshape(B * H * W, Cin)
    wm = w.transpose(0, 2, 3, 1).reshape(Cin, 4 * Cout)            # columns (dy, dx, cout)
    out = pallas_matmul(a, wm, jnp.tile(b, 4))
    out = out.reshape(B, H, W, 2, 2, Cout).transpose(0, 1, 3, 2, 4, 5)
    return out.reshape(B, 2 * H, 2 * W, Cout)


# ----------------------------------------------------------------------------
# Resampling glue (plain JAX, NHWC)
# ----------------------------------------------------------------------------
def _cubic_weights(t, A=-0.75):
    def w_near(s):
        return (A + 2.0) * s ** 3 - (A + 3.0) * s ** 2 + 1.0

    def w_far(s):
        return A * s ** 3 - 5.0 * A * s ** 2 + 8.0 * A * s - 4.0 * A

    return jnp.stack([w_far(1.0 + t), w_near(t), w_near(1.0 - t), w_far(2.0 - t)], axis=-1)


def bicubic_resize(x, oh, ow):
    # TODO(synk): F.interpolate(bicubic, align_corners=False) is a gather-heavy resample;
    # kept in plain JAX glue.
    def _resize_axis(y, out_size, axis):
        in_size = y.shape[axis]
        src = (jnp.arange(out_size, dtype=jnp.float32) + 0.5) * (in_size / out_size) - 0.5
        i0 = jnp.floor(src)
        t = src - i0
        taps = i0[:, None] + jnp.arange(-1, 3, dtype=jnp.float32)[None, :]
        taps = jnp.clip(taps, 0, in_size - 1).astype(jnp.int32)     # border clamp
        wts = _cubic_weights(t)                                      # (out, 4)
        g = jnp.take(y, taps.reshape(-1), axis=axis)
        new_shape = y.shape[:axis] + (out_size, 4) + y.shape[axis + 1:]
        g = g.reshape(new_shape)
        w_shape = [1] * g.ndim
        w_shape[axis] = out_size
        w_shape[axis + 1] = 4
        return jnp.sum(g * wts.reshape(w_shape), axis=axis + 1)

    x = _resize_axis(x, oh, 1)
    x = _resize_axis(x, ow, 2)
    return x


def nearest_resize(x, oh, ow):
    B, H, W, C = x.shape
    if (H, W) == (oh, ow):
        return x
    ih = jnp.clip(jnp.floor(jnp.arange(oh) * (H / oh)), 0, H - 1).astype(jnp.int32)
    iw = jnp.clip(jnp.floor(jnp.arange(ow) * (W / ow)), 0, W - 1).astype(jnp.int32)
    return x[:, ih][:, :, iw]


def grid_sample_bilinear(x, grid):
    # TODO(synk): F.grid_sample (bilinear, align_corners=True, zeros padding) is a
    # data-dependent gather; kept in plain JAX glue.
    B, H, W, C = x.shape
    gx, gy = grid[..., 0], grid[..., 1]
    ix = (gx + 1.0) * 0.5 * (W - 1)
    iy = (gy + 1.0) * 0.5 * (H - 1)
    ix0 = jnp.floor(ix)
    iy0 = jnp.floor(iy)
    ix1 = ix0 + 1.0
    iy1 = iy0 + 1.0
    wx1 = ix - ix0
    wx0 = 1.0 - wx1
    wy1 = iy - iy0
    wy0 = 1.0 - wy1
    xf = x.reshape(B, H * W, C)

    def gather(ixq, iyq):
        valid = ((ixq >= 0) & (ixq <= W - 1) & (iyq >= 0) & (iyq <= H - 1)).astype(x.dtype)
        ixc = jnp.clip(ixq, 0, W - 1).astype(jnp.int32)
        iyc = jnp.clip(iyq, 0, H - 1).astype(jnp.int32)
        flat = (iyc * W + ixc).reshape(B, -1)
        g = jax.vmap(lambda xb, idx: jnp.take(xb, idx, axis=0))(xf, flat)
        g = g.reshape(B, *ixq.shape[1:], C)
        return g * valid[..., None]

    return (gather(ix0, iy0) * (wx0 * wy0)[..., None]
            + gather(ix1, iy0) * (wx1 * wy0)[..., None]
            + gather(ix0, iy1) * (wx0 * wy1)[..., None]
            + gather(ix1, iy1) * (wx1 * wy1)[..., None])


# ----------------------------------------------------------------------------
# Module forward functions (NHWC activations)
# ----------------------------------------------------------------------------
def afn_forward(p, x):
    """AdaptiveFeatureNorm."""
    B, H, W, C = x.shape
    HW = H * W
    pooled = jnp.mean(x, axis=(1, 2))                               # AdaptiveAvgPool2d(1)
    # degenerate M==batch GEMMs: keep in plain XLA (Pallas dispatch would dominate)
    w1 = p['w1'].reshape(C // 4, C)
    w2 = p['w2'].reshape(2 * C, C // 4)
    h = jax.nn.relu(pooled @ w1.T + p['b1'])
    stats = h @ w2.T + p['b2']                                      # (B, 2C)
    ag, ab = stats[:, :C], stats[:, C:]
    gamma = p['gamma'].reshape(C)
    beta = p['beta'].reshape(C)
    xf = x.reshape(B, HW, C)
    if HW >= C:
        # spatial on lanes (shallow levels): reduce over lanes
        out = _pallas_afn_call(xf.transpose(0, 2, 1),
                               ag.reshape(B, C, 1), ab.reshape(B, C, 1),
                               gamma.reshape(1, C, 1), beta.reshape(1, C, 1), axis=2)
        out = out.transpose(0, 2, 1)
    else:
        # channels on lanes (deep pyramid levels, H*W <= 16): lane-dense
        out = _pallas_afn_call(xf,
                               ag.reshape(B, 1, C), ab.reshape(B, 1, C),
                               gamma.reshape(1, 1, C), beta.reshape(1, 1, C), axis=1)
    return out.reshape(B, H, W, C)


def msfa_forward(p, x, num_heads=8):
    """MultiScaleFrequencyAttention."""
    B, H, W, C = x.shape
    hd = C // num_heads
    scale = float(C) ** (-0.5)                       # PyTorch: self.scale = dim ** -0.5
    # ---- spatial attention -------------------------------------------------
    qkv = conv2d(x, p['qkv']['w'], p['qkv']['b'])                   # (B, H, W, 3C)
    qkv = qkv.reshape(B, H, W, 3, num_heads, hd).transpose(3, 0, 4, 5, 1, 2)
    G = B * num_heads * hd
    q = qkv[0].reshape(G, H, W)
    k = qkv[1].reshape(G, H, W)
    v = qkv[2].reshape(G, H, W)
    o = pallas_attn(q, k, v, scale)
    # matches (attn @ v).transpose(1, 2).reshape(B, C, H, W)
    o = o.reshape(B, num_heads, hd, H, W).transpose(0, 3, 4, 2, 1).reshape(B, H, W, C)
    attn_out = conv2d(o, p['proj']['w'], p['proj']['b'])
    # ---- frequency decomposition (3 grouped 3x3 convs, fused 1x1 convs) ----
    groups = C // 4
    fw = jax.nn.softmax(p['freq_weights'], axis=0)                  # (3,)
    xp = jnp.pad(x, ((0, 0), (1, 1), (1, 1), (0, 0)))
    taps = [xp[:, dy:dy + H, dx:dx + W, :].reshape(B, H, W, groups, 4)
            for dy in range(3) for dx in range(3)]
    patches = jnp.concatenate(taps, axis=-1)                        # (B,H,W,groups,36)
    w1 = jnp.stack([p['fd'][j]['w1'] for j in range(3)])            # (3, groups, 4, 3, 3)
    w1 = w1.transpose(0, 1, 3, 4, 2).reshape(3, groups, 36)         # (tap, cin) ordering
    b1 = jnp.stack([p['fd'][j]['b1'] for j in range(3)])            # (3, groups)
    # TODO(synk): grouped conv is a tiny per-group (36 -> 1) contraction; left to XLA einsum
    h = jnp.einsum('bhwgk,jgk->bhwjg', patches, w1) + b1[None, None, None]
    h = jax.nn.gelu(h, approximate=False)                           # (B, H, W, 3, groups)
    # fuse the three 1x1 convs, folding softmax(freq_weights) into weights/bias
    w2 = jnp.stack([p['fd'][j]['w2'].reshape(C, groups) for j in range(3)])   # (3, C, groups)
    b2 = jnp.stack([p['fd'][j]['b2'] for j in range(3)])                      # (3, C)
    w2f = (fw[:, None, None] * w2).transpose(0, 2, 1).reshape(3 * groups, C)
    b2f = jnp.sum(fw[:, None] * b2, axis=0)
    freq_out = pallas_matmul(h.reshape(B * H * W, 3 * groups), w2f, b2f)
    freq_out = freq_out.reshape(B, H, W, C)
    return attn_out + freq_out


def arb_forward(p, x):
    """AdaptiveResidualBlock."""
    B, H, W, C = x.shape
    pooled = jnp.mean(x, axis=(1, 2))
    # router (M == batch): plain XLA GEMM + softmax
    route = jax.nn.softmax(pooled @ p['router']['w'].reshape(2, C).T + p['router']['b'],
                           axis=1)
    r0 = route[:, 0].reshape(B, 1, 1, 1)
    r1 = route[:, 1].reshape(B, 1, 1, 1)
    h = conv2d(x, p['b1_conv1']['w'], p['b1_conv1']['b'], padding=1)
    h = afn_forward(p['b1_afn1'], h)
    h = jax.nn.gelu(h, approximate=False)
    h = conv2d(h, p['b1_conv2']['w'], p['b1_conv2']['b'], padding=1)
    out1 = afn_forward(p['b1_afn2'], h)
    out2 = msfa_forward(p['msfa'], x)
    return x + r0 * out1 + r1 * out2


def tcm_forward(p, current, previous):
    """TemporalConsistencyModule."""
    B, H, W, C = current.shape
    cat1 = jnp.concatenate([current, previous], axis=-1)
    f = jax.nn.relu(conv2d(cat1, p['align1']['w'], p['align1']['b'], padding=1))
    flow = conv2d(f, p['align2']['w'], p['align2']['b'], padding=1)     # (B, H, W, 2)
    xx = jnp.broadcast_to(jnp.arange(W, dtype=jnp.float32).reshape(1, 1, W), (B, H, W))
    yy = jnp.broadcast_to(jnp.arange(H, dtype=jnp.float32).reshape(1, H, 1), (B, H, W))
    vx = 2.0 * (xx + flow[..., 0]) / max(W - 1, 1) - 1.0
    vy = 2.0 * (yy + flow[..., 1]) / max(H - 1, 1) - 1.0
    grid = jnp.stack([vx, vy], axis=-1)                                 # (B, H, W, 2)
    warped = grid_sample_bilinear(previous, grid)
    cat2 = jnp.concatenate([current, warped], axis=-1)
    a = jax.nn.relu(conv2d(cat2, p['ta1']['w'], p['ta1']['b']))
    attn = jax.nn.sigmoid(conv2d(a, p['ta2']['w'], p['ta2']['b']))
    cat3 = jnp.concatenate([current * attn, warped * (1.0 - attn)], axis=-1)
    return conv2d(cat3, p['fusion']['w'], p['fusion']['b'])


def aftnet_forward(params, x, prev_frame=None):
    # External interface is NCHW (PyTorch); internal activations are NHWC (channels on lanes).
    r = x
    if prev_frame is None:
        prev_frame = x
    x = jnp.transpose(x, (0, 2, 3, 1))
    prev = jnp.transpose(prev_frame, (0, 2, 3, 1))
    r_nhwc = jnp.transpose(r, (0, 2, 3, 1))

    def _to_nchw(y):
        return jnp.transpose(y, (0, 3, 1, 2))

    def _init_conv(y):
        y = conv2d(y, params['init_conv']['conv']['w'],
                   params['init_conv']['conv']['b'], padding=1)
        return afn_forward(params['init_conv']['afn'], y)

    x = _init_conv(x)
    prev_features = _init_conv(prev)            # torch.no_grad() is forward-identical

    encoder_features = [x]
    for enc in params['encoder']:
        x = arb_forward(enc['arb'], x)
        x = conv2d(x, enc['down']['w'], enc['down']['b'], stride=2)
        x = afn_forward(enc['afn'], x)
        encoder_features.append(x)

    prev_features = bicubic_resize(prev_features, x.shape[1], x.shape[2])
    prev_features = conv2d(prev_features, params['conv_middle']['w'], params['conv_middle']['b'])

    for blk in params['middle']:
        x = arb_forward(blk['arb'], x)
        x = tcm_forward(blk['tcm'], x, prev_features)
        prev_features = x

    out_layers = params['output_layers']
    outputs = [jnp.clip(
        _to_nchw(conv2d(x, out_layers[-1]['w'], out_layers[-1]['b'], padding=1)
                 + bicubic_resize(r_nhwc, x.shape[1], x.shape[2])), 0.0, 1.0)]

    rev_feats = encoder_features[::-1][1:]
    rev_pf = params['pyramid_fusion'][::-1]
    for i, dec in enumerate(params['decoder']):
        x = conv_transpose2d_2x2(x, dec['up']['w'], dec['up']['b'])
        s = rev_feats[i]
        x = nearest_resize(x, s.shape[1], s.shape[2])                   # adjust()
        x = conv2d(jnp.concatenate([x, s], axis=-1), rev_pf[i]['w'], rev_pf[i]['b'])
        x = afn_forward(dec['afn'], x)
        x = arb_forward(dec['arb'], x)
        ol = out_layers[-(i + 2)]
        outputs.append(jnp.clip(
            _to_nchw(conv2d(x, ol['w'], ol['b'], padding=1)
                     + bicubic_resize(r_nhwc, x.shape[1], x.shape[2])), 0.0, 1.0))
    return outputs[::-1]


# ----------------------------------------------------------------------------
# Deterministic parameter init (shapes mirror the PyTorch module __init__)
# ----------------------------------------------------------------------------
class _KeyGen:
    def __init__(self, key):
        self._key = key

    def __call__(self):
        self._key, sub = jax.random.split(self._key)
        return sub


def _conv_p(kg, cout, cin, k):
    return dict(w=0.05 * jax.random.normal(kg(), (cout, cin, k, k), jnp.float32),
                b=0.01 * jax.random.normal(kg(), (cout,), jnp.float32))


def _convT_p(kg, cin, cout, k):
    return dict(w=0.05 * jax.random.normal(kg(), (cin, cout, k, k), jnp.float32),
                b=0.01 * jax.random.normal(kg(), (cout,), jnp.float32))


def init_afn(kg, C):
    c1 = _conv_p(kg, C // 4, C, 1)
    c2 = _conv_p(kg, 2 * C, C // 4, 1)
    return dict(gamma=jnp.ones((C,), jnp.float32),
                beta=jnp.zeros((C,), jnp.float32),
                w1=c1['w'], b1=c1['b'], w2=c2['w'], b2=c2['b'])


def init_msfa(kg, C):
    groups = C // 4
    fd = []
    for _ in range(3):
        w1 = 0.05 * jax.random.normal(kg(), (C // 4, C // groups, 3, 3), jnp.float32)
        b1 = 0.01 * jax.random.normal(kg(), (C // 4,), jnp.float32)
        c2 = _conv_p(kg, C, C // 4, 1)
        fd.append(dict(w1=w1, b1=b1, w2=c2['w'], b2=c2['b']))
    return dict(qkv=_conv_p(kg, 3 * C, C, 1), proj=_conv_p(kg, C, C, 1),
                fd=fd, freq_weights=jnp.ones((3,), jnp.float32))


def init_arb(kg, C):
    return dict(b1_conv1=_conv_p(kg, C // 4, C, 3),
                b1_afn1=init_afn(kg, C // 4),
                b1_conv2=_conv_p(kg, C, C // 4, 3),
                b1_afn2=init_afn(kg, C),
                msfa=init_msfa(kg, C),
                router=_conv_p(kg, 2, C, 1))


def init_tcm(kg, C):
    return dict(align1=_conv_p(kg, C // 2, 2 * C, 3),
                align2=_conv_p(kg, 2, C // 2, 3),
                ta1=_conv_p(kg, C // 2, 2 * C, 1),
                ta2=_conv_p(kg, C, C // 2, 1),
                fusion=_conv_p(kg, C, 2 * C, 1))


def init_aftnet(key, in_channels=3, dim=16, num_blocks=1):
    kg = _KeyGen(key)
    return dict(
        init_conv=dict(conv=_conv_p(kg, dim, in_channels, 3), afn=init_afn(kg, dim)),
        encoder=[dict(arb=init_arb(kg, dim * 2 ** i),
                      down=_conv_p(kg, dim * 2 ** (i + 1), dim * 2 ** i, 2),
                      afn=init_afn(kg, dim * 2 ** (i + 1))) for i in range(3)],
        conv_middle=_conv_p(kg, dim * 8, dim, 1),
        middle=[dict(arb=init_arb(kg, dim * 8), tcm=init_tcm(kg, dim * 8))
                for _ in range(num_blocks)],
        decoder=[dict(up=_convT_p(kg, dim * 2 ** (i + 1), dim * 2 ** i, 2),
                      afn=init_afn(kg, dim * 2 ** i),
                      arb=init_arb(kg, dim * 2 ** i)) for i in range(2, -1, -1)],
        pyramid_fusion=[_conv_p(kg, dim * 2 ** i, dim * 2 ** i * 2, 1) for i in range(3)],
        output_layers=[_conv_p(kg, in_channels, dim * 2 ** i, 3) for i in range(4)],
    )


# ----------------------------------------------------------------------------
if __name__ == "__main__":
    IN_CH, DIM, NUM_BLOCKS = 3, 16, 1          # small but structure-consistent config
    B, H, W = 2, 16, 16
    root = jax.random.PRNGKey(0)
    k_x, k_p = jax.random.split(root)
    x = jax.random.uniform(k_x, (B, IN_CH, H, W), jnp.float32)
    params = init_aftnet(k_p, IN_CH, DIM, NUM_BLOCKS)

    outs = aftnet_forward(params, x, prev_frame=None)
    outs = jax.block_until_ready(outs)

    expected = [(B, IN_CH, H // (2 ** i), W // (2 ** i)) for i in range(4)]
    for o, shp in zip(outs, expected):
        assert o.shape == shp, (o.shape, shp)
        assert bool(jnp.all(jnp.isfinite(o)))
    print("KERNEL_OK")
</pallas_src>

<mosaic_0001>
module attributes {stable_mosaic.version = 11 : i64} {
  func.func @_matmul_bias_kernel(%arg0: i32, %arg1: memref<256x27xbf16, #tpu.memory_space<vmem>>, %arg2: memref<27x128xbf16, #tpu.memory_space<vmem>>, %arg3: memref<1x128xf32, #tpu.memory_space<vmem>>, %arg4: memref<256x128xf32, #tpu.memory_space<vmem>>) attributes {dimension_semantics = [#tpu.dimension_semantics<parallel>], iteration_bounds = array<i64: 2>, scalar_prefetch = 0 : i64, scratch_operands = 0 : i64, tpu.core_type = #tpu.core_type<tc>, window_params = [{transform_indices = @transform_0, window_bounds = array<i64: 256, 27>}, {pipeline_mode = #tpu.pipeline_mode<synchronous>, transform_indices = @transform_1, window_bounds = array<i64: 27, 128>}, {pipeline_mode = #tpu.pipeline_mode<synchronous>, transform_indices = @transform_2, window_bounds = array<i64: 1, 128>}, {transform_indices = @transform_3, window_bounds = array<i64: 256, 128>}]} {
    %c0 = arith.constant 0 : index
    %c0_0 = arith.constant 0 : index
    %0 = vector.load %arg1[%c0, %c0_0] : memref<256x27xbf16, #tpu.memory_space<vmem>>, vector<256x27xbf16>
    %c0_1 = arith.constant 0 : index
    %c0_2 = arith.constant 0 : index
    %1 = vector.load %arg2[%c0_1, %c0_2] : memref<27x128xbf16, #tpu.memory_space<vmem>>, vector<27x128xbf16>
    %cst = arith.constant dense<0.000000e+00> : vector<256x128xf32>
    %2 = tpu.matmul %0, %1, %cst {dimension_numbers = #tpu.dot_dimension_numbers<[1], [0], [0], [1], [0, 0, 1, 1], [], []>} : vector<256x27xbf16>, vector<27x128xbf16>, vector<256x128xf32> -> vector<256x128xf32>
    %c0_3 = arith.constant 0 : index
    %c0_4 = arith.constant 0 : index
    %3 = vector.load %arg3[%c0_3, %c0_4] : memref<1x128xf32, #tpu.memory_space<vmem>>, vector<1x128xf32>
    %4 = vector.broadcast %3 : vector<1x128xf32> to vector<256x128xf32>
    %5 = arith.addf %2, %4 : vector<256x128xf32>
    %c0_5 = arith.constant 0 : index
    %c0_6 = arith.constant 0 : index
    %6 = vector.load %arg4[%c0_5, %c0_6] : memref<256x128xf32, #tpu.memory_space<vmem>>, vector<256x128xf32>
    tpu.vector_store %arg4[%c0_5, %c0_6], %5 {strides = array<i32>} : memref<256x128xf32, #tpu.memory_space<vmem>>, vector<256x128xf32>,
    return
  }
  func.func @transform_0(%arg0: i32) -> (i32, i32) {
    %c0_i32 = arith.constant 0 : i32
    %c0_i32_0 = arith.constant 0 : i32
    return %arg0, %c0_i32 : i32, i32
  }
  func.func @transform_1(%arg0: i32) -> (i32, i32) {
    %c0_i32 = arith.constant 0 : i32
    %c0_i32_0 = arith.constant 0 : i32
    %c0_i32_1 = arith.constant 0 : i32
    return %c0_i32, %c0_i32_0 : i32, i32
  }
  func.func @transform_2(%arg0: i32) -> (i32, i32) {
    %c0_i32 = arith.constant 0 : i32
    %c0_i32_0 = arith.constant 0 : i32
    %c0_i32_1 = arith.constant 0 : i32
    return %c0_i32, %c0_i32_0 : i32, i32
  }
  func.func @transform_3(%arg0: i32) -> (i32, i32) {
    %c0_i32 = arith.constant 0 : i32
    %c0_i32_0 = arith.constant 0 : i32
    return %arg0, %c0_i32 : i32, i32
  }
}

</mosaic_0001>

<llo_original>
// kernel: pallas_matmul.1
$region0: #{pallas_matmul.1}
  #allocation0 [shape = 'u32[]', space=smem, size = 0x4, offset = 0x4, fixed_abs, tag = 'smem constant byte address 0x4 - core index']
  #allocation1 [shape = 'u32[144,128]{1,0:T(1,128)}', space=vmem, size = 0x12000, scoped, tag = 'internal scratch']
  %s0 = inlined_call_operand.vmem [shape: bf16[512,27], index: 0, kind: input, shape index: {}]
  %s1 = inlined_call_operand.vmem [shape: bf16[27,128], index: 1, kind: input, shape index: {}]
  %s2 = inlined_call_operand.vmem [shape: f32[1,128], index: 2, kind: input, shape index: {}]
  %s3 = inlined_call_operand.vmem [shape: f32[512,128], index: 3, kind: output, shape index: {}]
  %s4 = sld [smem:[#allocation0]]
  $region45: #{pallas_matmul.1} parent=0
    _
  %s6 = ssub.s32 1, %s4
  %s7 = scalar_select 0, %s6, %s4
  loop: start=0, step=1, limit=4
  $region2: #{pallas_matmul.1} parent=0 // loop_pre_header
    _
  $region3: #{pallas_matmul.1} parent=0 // loop_header
    %s9 = sphi 0, %s13
    %p10 = scmp.ge.s32.totalorder %s9, 4
    %s19 = sphi 0, %s21
    %s22 = sphi 0, %s19
    %s23 = sphi 0, %s22
    %s39 = sphi 0, %s23
    %s43 = sphi 0, %s43
    %s45 = sphi 0, %s43
    %s46 = sphi 0, %s45
    %s60 = sphi 0, %s46
    %s64 = sphi 0, %s64
    %s66 = sphi 0, %s64
    %s67 = sphi 0, %s66
    %s81 = sphi 0, %s67
    %s87 = sphi 0, %s89
    %s90 = sphi 0, %s87
    %s91 = sphi 0, %s90
    %s107 = sphi 0, %s91
  $region4: #{pallas_matmul.1} parent=0 // loop_header_branch
    %12 = sbr.rel (%p10) target = $region8
  $region5: #{pallas_matmul.1} parent=0 // loop_body
    %s14 = ssub.s32 %s9, 1
    %s15 = ssub.s32 %s9, 2
    %s16 = sadd.s32 %s9, 1
    %s17 = ssub.s32 %s9, %s16
    %p18 = scmp.eq.s32.totalorder %s17, 0
    %s20 = sadd.s32 %s19, 1
    %s21 = scalar_select %p18, %s19, %s20
    %p24 = pneg %p18
    %p25 = scmp.eq.s32.totalorder %s9, 1
    %p26 = por %p24, %p25
    %p27 = scmp.ne.s32.totalorder %s19, %s22
    %p28 = scmp.eq.s32.totalorder %s9, 0
    %p29 = por %p27, %p28
    %p30 = scmp.ne.s32.totalorder %s19, %s22
    %p31 = scmp.eq.s32.totalorder %s14, 1
    %p32 = por %p30, %p31
    %p33 = scmp.ne.s32.totalorder %s22, %s23
    %p34 = scmp.eq.s32.totalorder %s14, 0
    %p35 = por %p33, %p34
    %p36 = scmp.ne.s32.totalorder %s22, %s23
    %p37 = scmp.eq.s32.totalorder %s15, 1
    %p38 = por %p36, %p37
    %p40 = scmp.ne.s32.totalorder %s23, %s39
    %p41 = scmp.eq.s32.totalorder %s15, 0
    %p42 = por %p40, %p41
    %s44 = sadd.s32 %s43, 1
    %p47 = scmp.eq.s32.totalorder %s9, 1
    %p48 = scmp.ne.s32.totalorder %s43, %s45
    %p49 = scmp.eq.s32.totalorder %s9, 0
    %p50 = por %p48, %p49
    %p51 = scmp.ne.s32.totalorder %s43, %s45
    %p52 = scmp.eq.s32.totalorder %s14, 1
    %p53 = por %p51, %p52
    %p54 = scmp.ne.s32.totalorder %s45, %s46
    %p55 = scmp.eq.s32.totalorder %s14, 0
    %p56 = por %p54, %p55
    %p57 = scmp.ne.s32.totalorder %s45, %s46
    %p58 = scmp.eq.s32.totalorder %s15, 1
    %p59 = por %p57, %p58
    %p61 = scmp.ne.s32.totalorder %s46, %s60
    %p62 = scmp.eq.s32.totalorder %s15, 0
    %p63 = por %p61, %p62
    %s65 = sadd.s32 %s64, 1
    %p68 = scmp.eq.s32.totalorder %s9, 1
    %p69 = scmp.ne.s32.totalorder %s64, %s66
    %p70 = scmp.eq.s32.totalorder %s9, 0
    %p71 = por %p69, %p70
    %p72 = scmp.ne.s32.totalorder %s64, %s66
    %p73 = scmp.eq.s32.totalorder %s14, 1
    %p74 = por %p72, %p73
    %p75 = scmp.ne.s32.totalorder %s66, %s67
    %p76 = scmp.eq.s32.totalorder %s14, 0
    %p77 = por %p75, %p76
    %p78 = scmp.ne.s32.totalorder %s66, %s67
    %p79 = scmp.eq.s32.totalorder %s15, 1
    %p80 = por %p78, %p79
    %p82 = scmp.ne.s32.totalorder %s67, %s81
    %p83 = scmp.eq.s32.totalorder %s15, 0
    %p84 = por %p82, %p83
    %s85 = ssub.s32 %s9, %s16
    %p86 = scmp.eq.s32.totalorder %s85, 0
    %s88 = sadd.s32 %s87, 1
    %s89 = scalar_select %p86, %s87, %s88
    %p92 = pneg %p86
    %p93 = scmp.eq.s32.totalorder %s9, 1
    %p94 = por %p92, %p93
    %p95 = scmp.ne.s32.totalorder %s87, %s90
    %p96 = scmp.eq.s32.totalorder %s9, 0
    %p97 = por %p95, %p96
    %p98 = scmp.ne.s32.totalorder %s87, %s90
    %p99 = scmp.eq.s32.totalorder %s14, 1
    %p100 = por %p98, %p99
    %p101 = scmp.ne.s32.totalorder %s90, %s91
    %p102 = scmp.eq.s32.totalorder %s14, 0
    %p103 = por %p101, %p102
    %p104 = scmp.ne.s32.totalorder %s90, %s91
    %p105 = scmp.eq.s32.totalorder %s15, 1
    %p106 = por %p104, %p105
    %p108 = scmp.ne.s32.totalorder %s91, %s107
    %p109 = scmp.eq.s32.totalorder %s15, 0
    %p110 = por %p108, %p109
    %p111 = scmp.le.s32.totalorder 1, %s9
    %p112 = scmp.lt.s32.totalorder %s9, 3
    %p113 = pnand %p111, %p112
    %p114 = pneg %p113
    // Predicated region
    $region9: #{pallas_matmul.1} parent=5 // pred_check
      _
    $region10: #{pallas_matmul.1} parent=5 // pred_check_branch
      %116 = sbr.rel (%p113) target = $region12
    $region11: #{pallas_matmul.1} parent=5 // pred_region
      %s117 = ssub.s32 %s9, 1
      // Predicated region
      $region13: #{pallas_matmul.1} parent=11 // pred_check
        %p118 = pneg %p56
      $region14: #{pallas_matmul.1} parent=11 // pred_check_branch
        %120 = sbr.rel (%p118) target = $region16
      $region15: #{pallas_matmul.1} parent=11 // pred_region
        _
      $region16: #{pallas_matmul.1} parent=11 // pred_fallthru
        _
      // Predicated region
      $region17: #{pallas_matmul.1} parent=11 // pred_check
        %p121 = pneg %p77
      $region18: #{pallas_matmul.1} parent=11 // pred_check_branch
        %123 = sbr.rel (%p121) target = $region20
      $region19: #{pallas_matmul.1} parent=11 // pred_region
        _
      $region20: #{pallas_matmul.1} parent=11 // pred_fallthru
        _
    $region12: #{pallas_matmul.1} parent=5 // pred_fallthru
      _
    %p124 = scmp.lt.s32.totalorder %s9, 2
    // Predicated region
    $region21: #{pallas_matmul.1} parent=5 // pred_check
      %p125 = pneg %p124
    $region22: #{pallas_matmul.1} parent=5 // pred_check_branch
      %127 = sbr.rel (%p125) target = $region24
    $region23: #{pallas_matmul.1} parent=5 // pred_region
      // Predicated region
      $region25: #{pallas_matmul.1} parent=23 // pred_check
        %p128 = pneg %p29
      $region26: #{pallas_matmul.1} parent=23 // pred_check_branch
        %130 = sbr.rel (%p128) target = $region28
      $region27: #{pallas_matmul.1} parent=23 // pred_region
        %s131 = smul.u32 32, %s9
        %p132 = scmp.lt.s32.totalorder %s131, 63
        %s133 = scalar_select %p132, %s131, 63
        %s134 = smul.addr %s133, 4
        %s135 = scalar_lea.vmem %s0, %s134
        %s136 = smul.u32 32, %s9
      $region28: #{pallas_matmul.1} parent=23 // pred_fallthru
        _
    $region24: #{pallas_matmul.1} parent=5 // pred_fallthru
      _
    %p137 = scmp.le.s32.totalorder 1, %s9
    %p138 = scmp.lt.s32.totalorder %s9, 3
    %p139 = pnand %p137, %p138
    %p140 = pneg %p139
    // Predicated region
    $region29: #{pallas_matmul.1} parent=5 // pred_check
      _
    $region30: #{pallas_matmul.1} parent=5 // pred_check_branch
      %142 = sbr.rel (%p139) target = $region32
    $region31: #{pallas_matmul.1} parent=5 // pred_region
      %s143 = ssub.s32 %s9, 1
      %s144 = smul.u32 32, %s14
      %p145 = scmp.lt.s32.totalorder %s144, 63
      %s146 = scalar_select %p145, %s144, 63
      %s147 = smul.addr %s146, 4
      %s148 = scalar_lea.vmem %s0, %s147
      %p149 = pneg %p35
      %p150 = pneg %p32
      %p151 = pneg %p56
      %p152 = pneg %p53
      %p153 = pneg %p77
      %p154 = pneg %p74
      %p155 = pneg %p103
      %p156 = pneg %p100
      %s157 = smul.u32 32, %s14
      %p158 = scmp.lt.s32.totalorder %s157, 63
      %s159 = scalar_select %p158, %s157, 63
      %s160 = smul.addr %s159, 8
      %s161 = scalar_lea.vmem %s3, %s160
      %s162 = smul.u32 32, %s14
      %p163 = scmp.lt.s32.totalorder %s162, 63
      %s164 = scalar_select %p163, %s162, 63
      %s165 = smul.addr %s164, 4
      %s166 = scalar_lea.vmem %s0, %s165
      %s167 = smul.u32 32, %s14
      %s168 = smul.u32 32, %s14
      %p169 = scmp.lt.s32.totalorder %s168, 63
      %s170 = scalar_select %p169, %s168, 63
      %s171 = smul.addr %s170, 8
      %s172 = scalar_lea.vmem %s3, %s171
      %s173 = smul.u32 32, %s14
      %v175 = vld [vmem:[%s166] sm:$0xf]
      %v176 = vld [vmem:[%s166 + $0x4] sm:$0xf]
      %v177 = vld [vmem:[%s166 + $0x8] sm:$0xf]
      %v178 = vld [vmem:[%s166 + $0xc] sm:$0xf]
      %v179 = vld [vmem:[%s166 + $0x10] sm:$0xf]
      %v180 = vld [vmem:[%s166 + $0x14] sm:$0xf]
      %v181 = vld [vmem:[%s166 + $0x18] sm:$0xf]
      %v182 = vld [vmem:[%s166 + $0x1c] sm:$0xf]
      %v183 = vld [vmem:[%s166 + $0x20] sm:$0xf]
      %v184 = vld [vmem:[%s166 + $0x24] sm:$0xf]
      %v185 = vld [vmem:[%s166 + $0x28] sm:$0xf]
      %v186 = vld [vmem:[%s166 + $0x2c] sm:$0xf]
      %v187 = vld [vmem:[%s166 + $0x30] sm:$0xf]
      %v188 = vld [vmem:[%s166 + $0x34] sm:$0xf]
      %v189 = vld [vmem:[%s166 + $0x38] sm:$0xf]
      %v190 = vld [vmem:[%s166 + $0x3c] sm:$0xf]
      %v191 = vld [vmem:[%s166 + $0x40] sm:$0xf]
      %v192 = vld [vmem:[%s166 + $0x44] sm:$0xf]
      %v193 = vld [vmem:[%s166 + $0x48] sm:$0xf]
      %v194 = vld [vmem:[%s166 + $0x4c] sm:$0xf]
      %v195 = vld [vmem:[%s166 + $0x50] sm:$0xf]
      %v196 = vld [vmem:[%s166 + $0x54] sm:$0xf]
      %v197 = vld [vmem:[%s166 + $0x58] sm:$0xf]
      %v198 = vld [vmem:[%s166 + $0x5c] sm:$0xf]
      %v199 = vld [vmem:[%s166 + $0x60] sm:$0xf]
      %v200 = vld [vmem:[%s166 + $0x64] sm:$0xf]
      %v201 = vld [vmem:[%s166 + $0x68] sm:$0xf]
      %v202 = vld [vmem:[%s166 + $0x6c] sm:$0xf]
      %v203 = vld [vmem:[%s166 + $0x70] sm:$0xf]
      %v204 = vld [vmem:[%s166 + $0x74] sm:$0xf]
      %v205 = vld [vmem:[%s166 + $0x78] sm:$0xf]
      %v206 = vld [vmem:[%s166 + $0x7c] sm:$0xf]
      %v207 = vld [vmem:[%s1] sm:$0xf]
      %v208 = vld [vmem:[%s1 + $0x4] sm:$0xf]
      %v209 = vld [vmem:[%s1 + $0x8] sm:$0xf]
      %v210 = vld [vmem:[%s1 + $0xc] sm:$0x3]
      %v211 = vld [vmem:[%s2] sm:$0x1]
      %v213 = vlaneseq
      %v214 = vshrl.u32 %v213, 7
      %v215 = vsub.s32 0, %v214
      %v216 = vrot.slane %v211, %v215
      %v250 = vunpack.c.l.b16 %v175
      %v251 = vunpack.c.l.b16 %v176
      %v252 = vunpack.c.l.b16 %v177
      %v253 = vunpack.c.l.b16 %v178
      %v254 = vunpack.c.l.b16 %v179
      %v255 = vunpack.c.l.b16 %v180
      %v256 = vunpack.c.l.b16 %v181
      %v257 = vunpack.c.l.b16 %v182
      %v258 = vunpack.c.l.b16 %v183
      %v259 = vunpack.c.l.b16 %v184
      %v260 = vunpack.c.l.b16 %v185
      %v261 = vunpack.c.l.b16 %v186
      %v262 = vunpack.c.l.b16 %v187
      %v263 = vunpack.c.l.b16 %v188
      %v264 = vunpack.c.l.b16 %v189
      %v265 = vunpack.c.l.b16 %v190
      %v266 = vunpack.c.l.b16 %v191
      %v267 = vunpack.c.l.b16 %v192
      %v268 = vunpack.c.l.b16 %v193
      %v269 = vunpack.c.l.b16 %v194
      %v270 = vunpack.c.l.b16 %v195
      %v271 = vunpack.c.l.b16 %v196
      %v272 = vunpack.c.l.b16 %v197
      %v273 = vunpack.c.l.b16 %v198
      %v274 = vunpack.c.l.b16 %v199
      %v275 = vunpack.c.l.b16 %v200
      %v276 = vunpack.c.l.b16 %v201
      %v277 = vunpack.c.l.b16 %v202
      %v278 = vunpack.c.l.b16 %v203
      %v279 = vunpack.c.l.b16 %v204
      %v280 = vunpack.c.l.b16 %v205
      %v281 = vunpack.c.l.b16 %v206
      %v282 = vpack.c.b16 %v251, %v250
      %v283 = vpack.c.b16 %v253, %v252
      %v284 = vpack.c.b16 %v255, %v254
      %v285 = vpack.c.b16 %v257, %v256
      %v286 = vpack.c.b16 %v259, %v258
      %v287 = vpack.c.b16 %v261, %v260
      %v288 = vpack.c.b16 %v263, %v262
      %v289 = vpack.c.b16 %v265, %v264
      %v290 = vpack.c.b16 %v267, %v266
      %v291 = vpack.c.b16 %v269, %v268
      %v292 = vpack.c.b16 %v271, %v270
      %v293 = vpack.c.b16 %v273, %v272
      %v294 = vpack.c.b16 %v275, %v274
      %v295 = vpack.c.b16 %v277, %v276
      %v296 = vpack.c.b16 %v279, %v278
      %v297 = vpack.c.b16 %v281, %v280
      %v302 = vunpack.c.l.b16 %v207
      %v303 = vunpack.c.l.b16 %v208
      %v304 = vunpack.c.l.b16 %v209
      %v305 = vunpack.c.l.b16 %v210
      %v306 = vpack.c.b16 %v303, %v302
      %v307 = vpack.c.b16 %v305, %v304
      %vm309 = vcmask 220160
      %v311 = vsel %vm309, %v282, 0
      %v314 = vsel %vm309, %v283, 0
      %v317 = vsel %vm309, %v284, 0
      %v320 = vsel %vm309, %v285, 0
      %v323 = vsel %vm309, %v286, 0
      %v326 = vsel %vm309, %v287, 0
      %v329 = vsel %vm309, %v288, 0
      %v332 = vsel %vm309, %v289, 0
      %v335 = vsel %vm309, %v290, 0
      %v338 = vsel %vm309, %v291, 0
      %v341 = vsel %vm309, %v292, 0
      %v344 = vsel %vm309, %v293, 0
      %v347 = vsel %vm309, %v294, 0
      %v350 = vsel %vm309, %v295, 0
      %v353 = vsel %vm309, %v296, 0
      %v356 = vsel %vm309, %v297, 0
      %vm358 = vcmask 1044480
      %vm359 = vcmask 1045504
      %v360 = vsel %vm358, 4294967295, 65535
      %v361 = vsel %vm359, %v360, 0
      %v363 = vand.u32 %v307, %v361
      %365 = vmatprep.subr.bf16.mxu0 0
      %366 = vmatpush1.bf16.msra.mxu0 %v306
      %367 = vmatprep.subr.bf16.mxu0 0
      %368 = vmatpush1.bf16.msra.mxu0 %v363
      %369 = vmatprep.subr.bf16.mxu0 0
      %370 = vmatpush1.bf16.msra.mxu0 0
      %371 = vmatprep.subr.bf16.mxu0 0
      %372 = vmatpush1.bf16.msra.mxu0 0
      %373 = vmatprep.subr.bf16.mxu0 0
      %374 = vmatpush1.bf16.msra.mxu0 0
      %375 = vmatprep.subr.bf16.mxu0 0
      %376 = vmatpush1.bf16.msra.mxu0 0
      %377 = vmatprep.subr.bf16.mxu0 0
      %378 = vmatpush1.bf16.msra.mxu0 0
      %379 = vmatprep.subr.bf16.mxu0 0
      %380 = vmatpush1.bf16.msra.mxu0 0
      %381 = vmatprep.subr.bf16.mxu0 0
      %382 = vmatpush1.bf16.msra.mxu0 0
      %383 = vmatprep.subr.bf16.mxu0 0
      %384 = vmatpush1.bf16.msra.mxu0 0
      %385 = vmatprep.subr.bf16.mxu0 0
      %386 = vmatpush1.bf16.msra.mxu0 0
      %387 = vmatprep.subr.bf16.mxu0 0
      %388 = vmatpush1.bf16.msra.mxu0 0
      %389 = vmatprep.subr.bf16.mxu0 0
      %390 = vmatpush1.bf16.msra.mxu0 0
      %391 = vmatprep.subr.bf16.mxu0 0
      %392 = vmatpush1.bf16.msra.mxu0 0
      %393 = vmatprep.subr.bf16.mxu0 0
      %394 = vmatpush1.bf16.msra.mxu0 0
      %395 = vmatprep.subr.bf16.mxu0 0
      %396 = vmatpush1.bf16.msra.mxu0 0
      %397 = vmatprep.mubr.bf16.mxu0 0
      %398 = vmatmul.mubr.bf16.gmra.mrb[0].mxu0 %v311
      %v399 = vpop.f32.mrb[0].mxu0
      %v400 = vadd.f32 %v216, %v399
      %v401 = vpop.f32.mrb[0].mxu0
      %v402 = vpop.f32.mrb[0].mxu0
      %v403 = vadd.f32 %v216, %v402
      %v404 = vpop.f32.mrb[0].mxu0
      %405 = vmatprep.mubr.bf16.mxu0 0
      %406 = vmatmul.mubr.bf16.gmra.mrb[0].mxu0 %v314
      %v407 = vpop.f32.mrb[0].mxu0
      %v408 = vadd.f32 %v216, %v407
      %v409 = vpop.f32.mrb[0].mxu0
      %v410 = vpop.f32.mrb[0].mxu0
      %v411 = vadd.f32 %v216, %v410
      %v412 = vpop.f32.mrb[0].mxu0
      %413 = vmatprep.mubr.bf16.mxu0 0
      %414 = vmatmul.mubr.bf16.gmra.mrb[0].mxu0 %v317
      %v415 = vpop.f32.mrb[0].mxu0
      %v416 = vadd.f32 %v216, %v415
      %v417 = vpop.f32.mrb[0].mxu0
      %v418 = vpop.f32.mrb[0].mxu0
      %v419 = vadd.f32 %v216, %v418
      %v420 = vpop.f32.mrb[0].mxu0
      %421 = vmatprep.mubr.bf16.mxu0 0
      %422 = vmatmul.mubr.bf16.gmra.mrb[0].mxu0 %v320
      %v423 = vpop.f32.mrb[0].mxu0
      %v424 = vadd.f32 %v216, %v423
      %v425 = vpop.f32.mrb[0].mxu0
      %v426 = vpop.f32.mrb[0].mxu0
      %v427 = vadd.f32 %v216, %v426
      %v428 = vpop.f32.mrb[0].mxu0
      %429 = vmatprep.mubr.bf16.mxu0 0
      %430 = vmatmul.mubr.bf16.gmra.mrb[0].mxu0 %v323
      %v431 = vpop.f32.mrb[0].mxu0
      %v432 = vadd.f32 %v216, %v431
      %v433 = vpop.f32.mrb[0].mxu0
      %v434 = vpop.f32.mrb[0].mxu0
      %v435 = vadd.f32 %v216, %v434
      %v436 = vpop.f32.mrb[0].mxu0
      %437 = vmatprep.mubr.bf16.mxu0 0
      %438 = vmatmul.mubr.bf16.gmra.mrb[0].mxu0 %v326
      %v439 = vpop.f32.mrb[0].mxu0
      %v440 = vadd.f32 %v216, %v439
      %v441 = vpop.f32.mrb[0].mxu0
      %v442 = vpop.f32.mrb[0].mxu0
      %v443 = vadd.f32 %v216, %v442
      %v444 = vpop.f32.mrb[0].mxu0
      %445 = vmatprep.mubr.bf16.mxu0 0
      %446 = vmatmul.mubr.bf16.gmra.mrb[0].mxu0 %v329
      %v447 = vpop.f32.mrb[0].mxu0
      %v448 = vadd.f32 %v216, %v447
      %v449 = vpop.f32.mrb[0].mxu0
      %v450 = vpop.f32.mrb[0].mxu0
      %v451 = vadd.f32 %v216, %v450
      %v452 = vpop.f32.mrb[0].mxu0
      %453 = vmatprep.mubr.bf16.mxu0 0
      %454 = vmatmul.mubr.bf16.gmra.mrb[0].mxu0 %v332
      %v455 = vpop.f32.mrb[0].mxu0
      %v456 = vadd.f32 %v216, %v455
      %v457 = vpop.f32.mrb[0].mxu0
      %v458 = vpop.f32.mrb[0].mxu0
      %v459 = vadd.f32 %v216, %v458
      %v460 = vpop.f32.mrb[0].mxu0
      %461 = vmatprep.mubr.bf16.mxu0 0
      %462 = vmatmul.mubr.bf16.gmra.mrb[0].mxu0 %v335
      %v463 = vpop.f32.mrb[0].mxu0
      %v464 = vadd.f32 %v216, %v463
      %v465 = vpop.f32.mrb[0].mxu0
      %v466 = vpop.f32.mrb[0].mxu0
      %v467 = vadd.f32 %v216, %v466
      %v468 = vpop.f32.mrb[0].mxu0
      %469 = vmatprep.mubr.bf16.mxu0 0
      %470 = vmatmul.mubr.bf16.gmra.mrb[0].mxu0 %v338
      %v471 = vpop.f32.mrb[0].mxu0
      %v472 = vadd.f32 %v216, %v471
      %v473 = vpop.f32.mrb[0].mxu0
      %v474 = vpop.f32.mrb[0].mxu0
      %v475 = vadd.f32 %v216, %v474
      %v476 = vpop.f32.mrb[0].mxu0
      %477 = vmatprep.mubr.bf16.mxu0 0
      %478 = vmatmul.mubr.bf16.gmra.mrb[0].mxu0 %v341
      %v479 = vpop.f32.mrb[0].mxu0
      %v480 = vadd.f32 %v216, %v479
      %v481 = vpop.f32.mrb[0].mxu0
      %v482 = vpop.f32.mrb[0].mxu0
      %v483 = vadd.f32 %v216, %v482
      %v484 = vpop.f32.mrb[0].mxu0
      %485 = vmatprep.mubr.bf16.mxu0 0
      %486 = vmatmul.mubr.bf16.gmra.mrb[0].mxu0 %v344
      %v487 = vpop.f32.mrb[0].mxu0
      %v488 = vadd.f32 %v216, %v487
      %v489 = vpop.f32.mrb[0].mxu0
      %v490 = vpop.f32.mrb[0].mxu0
      %v491 = vadd.f32 %v216, %v490
      %v492 = vpop.f32.mrb[0].mxu0
      %493 = vmatprep.mubr.bf16.mxu0 0
      %494 = vmatmul.mubr.bf16.gmra.mrb[0].mxu0 %v347
      %v495 = vpop.f32.mrb[0].mxu0
      %v496 = vadd.f32 %v216, %v495
      %v497 = vpop.f32.mrb[0].mxu0
      %v498 = vpop.f32.mrb[0].mxu0
      %v499 = vadd.f32 %v216, %v498
      %v500 = vpop.f32.mrb[0].mxu0
      %501 = vmatprep.mubr.bf16.mxu0 0
      %502 = vmatmul.mubr.bf16.gmra.mrb[0].mxu0 %v350
      %v503 = vpop.f32.mrb[0].mxu0
      %v504 = vadd.f32 %v216, %v503
      %v505 = vpop.f32.mrb[0].mxu0
      %v506 = vpop.f32.mrb[0].mxu0
      %v507 = vadd.f32 %v216, %v506
      %v508 = vpop.f32.mrb[0].mxu0
      %509 = vmatprep.mubr.bf16.mxu0 0
      %510 = vmatmul.mubr.bf16.gmra.mrb[0].mxu0 %v353
      %v511 = vpop.f32.mrb[0].mxu0
      %v512 = vadd.f32 %v216, %v511
      %v513 = vpop.f32.mrb[0].mxu0
      %v514 = vpop.f32.mrb[0].mxu0
      %v515 = vadd.f32 %v216, %v514
      %v516 = vpop.f32.mrb[0].mxu0
      %517 = vmatprep.mubr.bf16.mxu0 0
      %518 = vmatmul.mubr.bf16.gmra.mrb[0].mxu0 %v356
      %v519 = vpop.f32.mrb[0].mxu0
      %v520 = vadd.f32 %v216, %v519
      %v521 = vpop.f32.mrb[0].mxu0
      %v522 = vpop.f32.mrb[0].mxu0
      %v523 = vadd.f32 %v216, %v522
      %v524 = vpop.f32.mrb[0].mxu0
      %525 = vdwg.mxu0
      %526 = vst [vmem:[%s172] sm:$0xff] %v400
      %527 = vst [vmem:[%s172 + $0x8] sm:$0xff] %v403
      %528 = vst [vmem:[%s172 + $0x10] sm:$0xff] %v408
      %529 = vst [vmem:[%s172 + $0x18] sm:$0xff] %v411
      %530 = vst [vmem:[%s172 + $0x20] sm:$0xff] %v416
      %531 = vst [vmem:[%s172 + $0x28] sm:$0xff] %v419
      %532 = vst [vmem:[%s172 + $0x30] sm:$0xff] %v424
      %533 = vst [vmem:[%s172 + $0x38] sm:$0xff] %v427
      %534 = vst [vmem:[%s172 + $0x40] sm:$0xff] %v432
      %535 = vst [vmem:[%s172 + $0x48] sm:$0xff] %v435
      %536 = vst [vmem:[%s172 + $0x50] sm:$0xff] %v440
      %537 = vst [vmem:[%s172 + $0x58] sm:$0xff] %v443
      %538 = vst [vmem:[%s172 + $0x60] sm:$0xff] %v448
      %539 = vst [vmem:[%s172 + $0x68] sm:$0xff] %v451
      %540 = vst [vmem:[%s172 + $0x70] sm:$0xff] %v456
      %541 = vst [vmem:[%s172 + $0x78] sm:$0xff] %v459
      %542 = vst [vmem:[%s172 + $0x80] sm:$0xff] %v464
      %543 = vst [vmem:[%s172 + $0x88] sm:$0xff] %v467
      %544 = vst [vmem:[%s172 + $0x90] sm:$0xff] %v472
      %545 = vst [vmem:[%s172 + $0x98] sm:$0xff] %v475
      %546 = vst [vmem:[%s172 + $0xa0] sm:$0xff] %v480
      %547 = vst [vmem:[%s172 + $0xa8] sm:$0xff] %v483
      %548 = vst [vmem:[%s172 + $0xb0] sm:$0xff] %v488
      %549 = vst [vmem:[%s172 + $0xb8] sm:$0xff] %v491
      %550 = vst [vmem:[%s172 + $0xc0] sm:$0xff] %v496
      %551 = vst [vmem:[%s172 + $0xc8] sm:$0xff] %v499
      %552 = vst [vmem:[%s172 + $0xd0] sm:$0xff] %v504
      %553 = vst [vmem:[%s172 + $0xd8] sm:$0xff] %v507
      %554 = vst [vmem:[%s172 + $0xe0] sm:$0xff] %v512
      %555 = vst [vmem:[%s172 + $0xe8] sm:$0xff] %v515
      %556 = vst [vmem:[%s172 + $0xf0] sm:$0xff] %v520
      %557 = vst [vmem:[%s172 + $0xf8] sm:$0xff] %v523
      %s558 = smul.u32 32, %s14
      %p559 = scmp.lt.s32.totalorder %s558, 63
      %s560 = scalar_select %p559, %s558, 63
      %s561 = smul.addr %s560, 8
      %s562 = scalar_lea.vmem %s3, %s561
      // Predicated region
      $region33: #{pallas_matmul.1} parent=31 // pred_check
        %p563 = pneg %p100
      $region34: #{pallas_matmul.1} parent=31 // pred_check_branch
        %565 = sbr.rel (%p563) target = $region36
      $region35: #{pallas_matmul.1} parent=31 // pred_region
        %s566 = smul.u32 32, %s14
      $region36: #{pallas_matmul.1} parent=31 // pred_fallthru
        _
    $region32: #{pallas_matmul.1} parent=5 // pred_fallthru
      _
    %p567 = scmp.le.s32.totalorder 2, %s9
    // Predicated region
    $region37: #{pallas_matmul.1} parent=5 // pred_check
      %p568 = pneg %p567
    $region38: #{pallas_matmul.1} parent=5 // pred_check_branch
      %570 = sbr.rel (%p568) target = $region40
    $region39: #{pallas_matmul.1} parent=5 // pred_region
      %s571 = ssub.s32 %s9, 2
      // Predicated region
      $region41: #{pallas_matmul.1} parent=39 // pred_check
        %p572 = pneg %p106
      $region42: #{pallas_matmul.1} parent=39 // pred_check_branch
        %574 = sbr.rel (%p572) target = $region44
      $region43: #{pallas_matmul.1} parent=39 // pred_region
        %s575 = smul.u32 32, %s15
        %p576 = scmp.lt.s32.totalorder %s575, 63
        %s577 = scalar_select %p576, %s575, 63
        %s578 = smul.addr %s577, 8
        %s579 = scalar_lea.vmem %s3, %s578
      $region44: #{pallas_matmul.1} parent=39 // pred_fallthru
        _
    $region40: #{pallas_matmul.1} parent=5 // pred_fallthru
      _
  $region6: #{pallas_matmul.1} parent=0 // loop_footer
    %s13 = sadd.s32 1, %s9
  $region7: #{pallas_matmul.1} parent=0 // loop_footer_branch
    %8 = sbr.rel target = $region3
  $region8: #{pallas_matmul.1} parent=0 // loop_exit
    _

</llo_original>
